<compile_context>
chip_gen: v6e
topology: v6e:2x2x1
jax: 0.10.0
libtpu: 0.0.40
codegen_flags: <defaults>
</compile_context>

<pallas_src>
import jax
import jax.numpy as jnp
import numpy as np
from jax.experimental import pallas as pl
from jax.experimental.pallas import tpu as pltpu


def _seq2doc_kernel(x_ref, yproj_ref, mask_ref, dW_ref, db_ref, out_ref):
    TB, S, Dx = x_ref.shape
    Dy = dW_ref.shape[1]

    x = x_ref[...]                       # (TB, S, Dx)  compute dtype (bf16/f32)
    y_proj = yproj_ref[...]              # (TB, Dy)     f32, already relu'd
    mask = mask_ref[...] != 0            # (TB, S)      True => masked position
    dW = dW_ref[...]                     # (Dx, Dy)     pre-transposed weight
    db = db_ref[...]                     # (1, Dy)      f32 bias

    # doc_linear + relu: ONE big MXU matmul over all TB*S sentences, f32 accum.
    x_proj = jnp.dot(x.reshape(TB * S, Dx), dW,
                     preferred_element_type=jnp.float32) + db
    x_proj = jnp.maximum(x_proj, 0.0).reshape(TB, S, Dy)

    # scores[b, s] = <y_proj[b], x_proj[b, s]>: VPU multiply + lane reduction
    # (keeps the tiny per-row dots off the MXU so they overlap with the matmul).
    scores = jnp.sum(x_proj * y_proj[:, None, :], axis=-1)            # (TB, S)
    scores = jnp.where(mask, -jnp.inf, scores)

    # Masked softmax over sentences (f32). Fully-masked rows -> NaN, as in torch.
    m = jnp.max(scores, axis=-1, keepdims=True)
    e = jnp.exp(scores - m)
    denom = jnp.sum(e, axis=-1, keepdims=True)
    att = e * pl.reciprocal(denom, approx=True)                       # (TB, S)

    # Attention pooling over the original x: VPU multiply + sublane reduction.
    pooled = jnp.sum(att[:, :, None] * x.astype(jnp.float32), axis=1)  # (TB, Dx)
    out_ref[...] = pooled.astype(out_ref.dtype)


def _choose_block_b(B, S, Dx, compute_dtype, target_x_tile_bytes=2 << 20):
    """Pick TB so the (double-buffered) x tile stays small; 8-align when tiling."""
    row_bytes = max(1, S * Dx * jnp.dtype(compute_dtype).itemsize)
    tb = max(1, target_x_tile_bytes // row_bytes)
    if tb >= B:
        return B
    return max(8, (tb // 8) * 8)


def seq2doc_att_forward(x, y, x_mask, params, *,
                        compute_dtype=jnp.bfloat16, block_b=None):
    """x: (B,S,Dx), y: (B,Dy), x_mask: (B,S) nonzero==masked. Returns (B,Dx) f32."""
    f32 = jnp.float32
    B, S, Dx = x.shape
    Dy = y.shape[1]

    # seq_linear hoisted out of the grid: one (B,Dy)@(Dy,Dy) matmul for the whole
    # batch at full MXU row utilization (plain XLA op, full precision).
    y_proj = jnp.maximum(
        jnp.dot(y.astype(f32), params["seq_W"].astype(f32),
                precision=jax.lax.Precision.HIGHEST)
        + params["seq_b"].astype(f32)[0], 0.0)                         # (B, Dy)

    if block_b is None:
        TB = _choose_block_b(B, S, Dx, compute_dtype)
    else:
        TB = int(block_b)
        TB = B if TB >= B else max(8, (TB // 8) * 8)   # keep leading block dim valid

    nb = pl.cdiv(B, TB)
    Bp = nb * TB

    xc = x.astype(compute_dtype)
    mk = x_mask.astype(jnp.int32)
    if Bp != B:
        pad = Bp - B
        # Padded rows are UNmasked zeros -> uniform softmax over zeros, no NaN.
        xc = jnp.pad(xc, ((0, pad), (0, 0), (0, 0)))
        y_proj = jnp.pad(y_proj, ((0, pad), (0, 0)))
        mk = jnp.pad(mk, ((0, pad), (0, 0)))

    dW = params["doc_W"].astype(compute_dtype)        # (Dx, Dy) pre-transposed
    db = params["doc_b"].astype(f32)                  # (1, Dy)

    # VMEM budget: pipelined tiles (x2 buffers) + weights + f32 temporaries,
    # with headroom, capped well under v7x's 64 MiB physical VMEM.
    cbytes = jnp.dtype(compute_dtype).itemsize
    est = (2 * (TB * S * Dx * cbytes + TB * Dy * 4 + TB * S * 4 + TB * Dx * 4)
           + 2 * (Dx * Dy * cbytes + Dy * 4)
           + TB * S * Dy * 4 + TB * S * Dx * 4)
    vmem_limit = int(min(max(2 * est, 16 << 20), 48 << 20))

    def build(single_buffer_weights):
        # Weights never change across the grid -> single-buffer them when supported.
        wkw = dict(pipeline_mode=pl.Buffered(1)) if single_buffer_weights else {}
        in_specs = [
            pl.BlockSpec((TB, S, Dx), lambda b: (b, 0, 0)),    # x
            pl.BlockSpec((TB, Dy), lambda b: (b, 0)),          # y_proj
            pl.BlockSpec((TB, S), lambda b: (b, 0)),           # mask
            pl.BlockSpec((Dx, Dy), lambda b: (0, 0), **wkw),   # doc_W (constant)
            pl.BlockSpec((1, Dy), lambda b: (0, 0), **wkw),    # doc_b (constant)
        ]
        return pl.pallas_call(
            _seq2doc_kernel,
            out_shape=jax.ShapeDtypeStruct((Bp, Dx), f32),
            grid=(nb,),
            in_specs=in_specs,
            out_specs=pl.BlockSpec((TB, Dx), lambda b: (b, 0)),
            compiler_params=pltpu.CompilerParams(
                dimension_semantics=("parallel",),
                vmem_limit_bytes=vmem_limit),
        )

    try:
        out = build(True)(xc, y_proj, mk, dW, db)
    except Exception:
        # Fallback for Pallas versions that reject single-buffered weight specs.
        out = build(False)(xc, y_proj, mk, dW, db)

    return out[:B]


def init_params(key, x_dim, y_dim):
    """PyTorch nn.Linear default init, stored TRANSPOSED ((in, out)) so the
    kernel never transposes weights on the critical path."""
    kd_w, kd_b, ks_w, ks_b = jax.random.split(key, 4)
    doc_bound = 1.0 / np.sqrt(x_dim)   # doc_linear: Linear(x_dim, y_dim)
    seq_bound = 1.0 / np.sqrt(y_dim)   # seq_linear: Linear(y_dim, y_dim)

    def u(k, shape, bound):
        return jax.random.uniform(k, shape, jnp.float32, -bound, bound)

    return {
        "doc_W": u(kd_w, (x_dim, y_dim), doc_bound),
        "doc_b": u(kd_b, (1, y_dim), doc_bound),
        "seq_W": u(ks_w, (y_dim, y_dim), seq_bound),
        "seq_b": u(ks_b, (1, y_dim), seq_bound),
    }


def seq2doc_ref(x, y, x_mask, params, compute_dtype=jnp.bfloat16):
    """Pure-JAX reference with matched operand precision (compute_dtype-rounded
    matmul operands, f32 accumulation) for tight correctness checking."""
    hp = jax.lax.Precision.HIGHEST
    f32 = jnp.float32
    xc = x.astype(compute_dtype).astype(f32)
    dW = params["doc_W"].astype(compute_dtype).astype(f32)
    x_proj = jax.nn.relu(
        jnp.einsum('bsd,dh->bsh', xc, dW, precision=hp) + params["doc_b"][0])
    y_proj = jax.nn.relu(
        jnp.dot(y.astype(f32), params["seq_W"].astype(f32), precision=hp)
        + params["seq_b"][0])
    scores = jnp.einsum('bh,bsh->bs', y_proj, x_proj, precision=hp)
    scores = jnp.where(x_mask.astype(bool), -jnp.inf, scores)
    att = jax.nn.softmax(scores, axis=-1)
    return jnp.einsum('bs,bsd->bd', att, xc, precision=hp)


if __name__ == "__main__":
    key = jax.random.PRNGKey(0)

    def run_case(B, S, X_DIM, Y_DIM, block_b=None, seed_offset=0):
        kx, ky, kp, kl = jax.random.split(jax.random.fold_in(key, seed_offset), 4)
        x = jax.random.normal(kx, (B, S, X_DIM), jnp.float32)
        y = jax.random.normal(ky, (B, Y_DIM), jnp.float32)
        # 1 => padded/masked sentence (documents of different lengths);
        # every row keeps at least one valid sentence (no NaN rows).
        lengths = np.asarray(jax.random.randint(kl, (B,), 1, S + 1, dtype=jnp.int32))
        x_mask = jnp.asarray(
            (np.arange(S)[None, :] >= lengths[:, None]).astype(np.int32))
        params = init_params(kp, X_DIM, Y_DIM)

        out = seq2doc_att_forward(x, y, x_mask, params, block_b=block_b)
        out = jax.block_until_ready(out)
        ref = seq2doc_ref(x, y, x_mask, params)
        assert out.shape == (B, X_DIM)
        np.testing.assert_allclose(np.asarray(out), np.asarray(ref),
                                   rtol=5e-3, atol=5e-3)

    # Small demo shape (single grid step, TB == B).
    run_case(B=2, S=8, X_DIM=32, Y_DIM=32)
    # Batch-tiled path (TB=8, B=20 padded to 24, grid of 3).
    run_case(B=20, S=8, X_DIM=32, Y_DIM=32, block_b=8, seed_offset=1)

    print("KERNEL_OK")
</pallas_src>

<mosaic_0001>
module attributes {stable_mosaic.version = 11 : i64} {
  func.func @_seq2doc_kernel(%arg0: i32, %arg1: memref<2x8x32xbf16, #tpu.memory_space<vmem>>, %arg2: memref<2x32xf32, #tpu.memory_space<vmem>>, %arg3: memref<2x8xi32, #tpu.memory_space<vmem>>, %arg4: memref<32x32xbf16, #tpu.memory_space<vmem>>, %arg5: memref<1x32xf32, #tpu.memory_space<vmem>>, %arg6: memref<2x32xf32, #tpu.memory_space<vmem>>) attributes {dimension_semantics = [#tpu.dimension_semantics<parallel>], iteration_bounds = array<i64: 1>, scalar_prefetch = 0 : i64, scratch_operands = 0 : i64, tpu.core_type = #tpu.core_type<tc>, window_params = [{transform_indices = @transform_0, window_bounds = array<i64: 2, 8, 32>}, {transform_indices = @transform_1, window_bounds = array<i64: 2, 32>}, {transform_indices = @transform_2, window_bounds = array<i64: 2, 8>}, {pipeline_mode = #tpu.pipeline_mode<synchronous>, transform_indices = @transform_3, window_bounds = array<i64: 32, 32>}, {pipeline_mode = #tpu.pipeline_mode<synchronous>, transform_indices = @transform_4, window_bounds = array<i64: 1, 32>}, {transform_indices = @transform_5, window_bounds = array<i64: 2, 32>}]} {
    %c0 = arith.constant 0 : index
    %c0_0 = arith.constant 0 : index
    %c0_1 = arith.constant 0 : index
    %0 = vector.load %arg1[%c0, %c0_0, %c0_1] : memref<2x8x32xbf16, #tpu.memory_space<vmem>>, vector<2x8x32xbf16>
    %c0_2 = arith.constant 0 : index
    %c0_3 = arith.constant 0 : index
    %1 = vector.load %arg2[%c0_2, %c0_3] : memref<2x32xf32, #tpu.memory_space<vmem>>, vector<2x32xf32>
    %c0_4 = arith.constant 0 : index
    %c0_5 = arith.constant 0 : index
    %2 = vector.load %arg3[%c0_4, %c0_5] : memref<2x8xi32, #tpu.memory_space<vmem>>, vector<2x8xi32>
    %c0_i32 = arith.constant 0 : i32
    %3 = vector.broadcast %c0_i32 : i32 to vector<2x8xi32>
    %4 = arith.cmpi ne, %2, %3 : vector<2x8xi32>
    %c0_6 = arith.constant 0 : index
    %c0_7 = arith.constant 0 : index
    %5 = vector.load %arg4[%c0_6, %c0_7] : memref<32x32xbf16, #tpu.memory_space<vmem>>, vector<32x32xbf16>
    %c0_8 = arith.constant 0 : index
    %c0_9 = arith.constant 0 : index
    %6 = vector.load %arg5[%c0_8, %c0_9] : memref<1x32xf32, #tpu.memory_space<vmem>>, vector<1x32xf32>
    %7 = vector.shape_cast %0 : vector<2x8x32xbf16> to vector<16x32xbf16>
    %cst = arith.constant dense<0.000000e+00> : vector<16x32xf32>
    %8 = tpu.matmul %7, %5, %cst {dimension_numbers = #tpu.dot_dimension_numbers<[1], [0], [0], [1], [0, 0, 1, 1], [], []>} : vector<16x32xbf16>, vector<32x32xbf16>, vector<16x32xf32> -> vector<16x32xf32>
    %9 = vector.broadcast %6 : vector<1x32xf32> to vector<16x32xf32>
    %10 = arith.addf %8, %9 : vector<16x32xf32>
    %cst_10 = arith.constant 0.000000e+00 : f32
    %11 = vector.broadcast %cst_10 : f32 to vector<16x32xf32>
    %12 = arith.maximumf %10, %11 : vector<16x32xf32>
    %13 = vector.shape_cast %12 : vector<16x32xf32> to vector<2x8x32xf32>
    %14 = vector.shape_cast %1 : vector<2x32xf32> to vector<2x1x32xf32>
    %15 = vector.broadcast %14 : vector<2x1x32xf32> to vector<2x8x32xf32>
    %16 = arith.mulf %13, %15 : vector<2x8x32xf32>
    %cst_11 = arith.constant dense<0.000000e+00> : vector<2x8xf32>
    %17 = vector.multi_reduction <add>, %16, %cst_11 [2] : vector<2x8x32xf32> to vector<2x8xf32>
    %cst_12 = arith.constant 0xFF800000 : f32
    %18 = vector.broadcast %cst_12 : f32 to vector<2x8xf32>
    %19 = arith.select %4, %18, %17 : vector<2x8xi1>, vector<2x8xf32>
    %cst_13 = arith.constant dense<0xFF800000> : vector<2xf32>
    %20 = vector.multi_reduction <maximumf>, %19, %cst_13 [1] : vector<2x8xf32> to vector<2xf32>
    %21 = vector.shape_cast %20 : vector<2xf32> to vector<2x1xf32>
    %22 = vector.broadcast %21 : vector<2x1xf32> to vector<2x8xf32>
    %23 = arith.subf %19, %22 : vector<2x8xf32>
    %24 = math.exp %23 : vector<2x8xf32>
    %cst_14 = arith.constant dense<0.000000e+00> : vector<2xf32>
    %25 = vector.multi_reduction <add>, %24, %cst_14 [1] : vector<2x8xf32> to vector<2xf32>
    %26 = vector.shape_cast %25 : vector<2xf32> to vector<2x1xf32>
    %27 = tpu.reciprocal %26 {approx = true} : vector<2x1xf32> -> vector<2x1xf32>
    %28 = vector.broadcast %27 : vector<2x1xf32> to vector<2x8xf32>
    %29 = arith.mulf %24, %28 : vector<2x8xf32>
    %30 = vector.shape_cast %29 : vector<2x8xf32> to vector<2x8x1xf32>
    %31 = arith.extf %0 : vector<2x8x32xbf16> to vector<2x8x32xf32>
    %32 = vector.broadcast %30 : vector<2x8x1xf32> to vector<2x8x32xf32>
    %33 = arith.mulf %32, %31 : vector<2x8x32xf32>
    %cst_15 = arith.constant dense<0.000000e+00> : vector<2x32xf32>
    %34 = vector.multi_reduction <add>, %33, %cst_15 [1] : vector<2x8x32xf32> to vector<2x32xf32>
    %c0_16 = arith.constant 0 : index
    %c0_17 = arith.constant 0 : index
    %35 = vector.load %arg6[%c0_16, %c0_17] : memref<2x32xf32, #tpu.memory_space<vmem>>, vector<2x32xf32>
    tpu.vector_store %arg6[%c0_16, %c0_17], %34 {strides = array<i32>} : memref<2x32xf32, #tpu.memory_space<vmem>>, vector<2x32xf32>,
    return
  }
  func.func @transform_0(%arg0: i32) -> (i32, i32, i32) {
    %c0_i32 = arith.constant 0 : i32
    %c0_i32_0 = arith.constant 0 : i32
    %c0_i32_1 = arith.constant 0 : i32
    return %arg0, %c0_i32, %c0_i32_0 : i32, i32, i32
  }
  func.func @transform_1(%arg0: i32) -> (i32, i32) {
    %c0_i32 = arith.constant 0 : i32
    %c0_i32_0 = arith.constant 0 : i32
    return %arg0, %c0_i32 : i32, i32
  }
  func.func @transform_2(%arg0: i32) -> (i32, i32) {
    %c0_i32 = arith.constant 0 : i32
    %c0_i32_0 = arith.constant 0 : i32
    return %arg0, %c0_i32 : i32, i32
  }
  func.func @transform_3(%arg0: i32) -> (i32, i32) {
    %c0_i32 = arith.constant 0 : i32
    %c0_i32_0 = arith.constant 0 : i32
    %c0_i32_1 = arith.constant 0 : i32
    return %c0_i32, %c0_i32_0 : i32, i32
  }
  func.func @transform_4(%arg0: i32) -> (i32, i32) {
    %c0_i32 = arith.constant 0 : i32
    %c0_i32_0 = arith.constant 0 : i32
    %c0_i32_1 = arith.constant 0 : i32
    return %c0_i32, %c0_i32_0 : i32, i32
  }
  func.func @transform_5(%arg0: i32) -> (i32, i32) {
    %c0_i32 = arith.constant 0 : i32
    %c0_i32_0 = arith.constant 0 : i32
    return %arg0, %c0_i32 : i32, i32
  }
}

module attributes {stable_mosaic.version = 11 : i64} {
  func.func @_seq2doc_kernel(%arg0: i32, %arg1: memref<2x8x32xbf16, #tpu.memory_space<vmem>>, %arg2: memref<2x32xf32, #tpu.memory_space<vmem>>, %arg3: memref<2x8xi32, #tpu.memory_space<vmem>>, %arg4: memref<32x32xbf16, #tpu.memory_space<vmem>>, %arg5: memref<1x32xf32, #tpu.memory_space<vmem>>, %arg6: memref<2x32xf32, #tpu.memory_space<vmem>>) attributes {dimension_semantics = [#tpu.dimension_semantics<parallel>], iteration_bounds = array<i64: 1>, scalar_prefetch = 0 : i64, scratch_operands = 0 : i64, tpu.core_type = #tpu.core_type<tc>, window_params = [{transform_indices = @transform_0, window_bounds = array<i64: 2, 8, 32>}, {transform_indices = @transform_1, window_bounds = array<i64: 2, 32>}, {transform_indices = @transform_2, window_bounds = array<i64: 2, 8>}, {pipeline_mode = #tpu.pipeline_mode<synchronous>, transform_indices = @transform_3, window_bounds = array<i64: 32, 32>}, {pipeline_mode = #tpu.pipeline_mode<synchronous>, transform_indices = @transform_4, window_bounds = array<i64: 1, 32>}, {transform_indices = @transform_5, window_bounds = array<i64: 2, 32>}]} {
    %c0 = arith.constant 0 : index
    %c0_0 = arith.constant 0 : index
    %c0_1 = arith.constant 0 : index
    %0 = vector.load %arg1[%c0, %c0_0, %c0_1] : memref<2x8x32xbf16, #tpu.memory_space<vmem>>, vector<2x8x32xbf16>
    %c0_2 = arith.constant 0 : index
    %c0_3 = arith.constant 0 : index
    %1 = vector.load %arg2[%c0_2, %c0_3] : memref<2x32xf32, #tpu.memory_space<vmem>>, vector<2x32xf32>
    %c0_4 = arith.constant 0 : index
    %c0_5 = arith.constant 0 : index
    %2 = vector.load %arg3[%c0_4, %c0_5] : memref<2x8xi32, #tpu.memory_space<vmem>>, vector<2x8xi32>
    %c0_i32 = arith.constant 0 : i32
    %3 = vector.broadcast %c0_i32 : i32 to vector<2x8xi32>
    %4 = arith.cmpi ne, %2, %3 : vector<2x8xi32>
    %c0_6 = arith.constant 0 : index
    %c0_7 = arith.constant 0 : index
    %5 = vector.load %arg4[%c0_6, %c0_7] : memref<32x32xbf16, #tpu.memory_space<vmem>>, vector<32x32xbf16>
    %c0_8 = arith.constant 0 : index
    %c0_9 = arith.constant 0 : index
    %6 = vector.load %arg5[%c0_8, %c0_9] : memref<1x32xf32, #tpu.memory_space<vmem>>, vector<1x32xf32>
    %7 = vector.shape_cast %0 : vector<2x8x32xbf16> to vector<16x32xbf16>
    %cst = arith.constant dense<0.000000e+00> : vector<16x32xf32>
    %8 = tpu.matmul %7, %5, %cst {dimension_numbers = #tpu.dot_dimension_numbers<[1], [0], [0], [1], [0, 0, 1, 1], [], []>} : vector<16x32xbf16>, vector<32x32xbf16>, vector<16x32xf32> -> vector<16x32xf32>
    %9 = vector.broadcast %6 : vector<1x32xf32> to vector<16x32xf32>
    %10 = arith.addf %8, %9 : vector<16x32xf32>
    %cst_10 = arith.constant 0.000000e+00 : f32
    %11 = vector.broadcast %cst_10 : f32 to vector<16x32xf32>
    %12 = arith.maximumf %10, %11 : vector<16x32xf32>
    %13 = vector.shape_cast %12 : vector<16x32xf32> to vector<2x8x32xf32>
    %14 = vector.shape_cast %1 : vector<2x32xf32> to vector<2x1x32xf32>
    %15 = vector.broadcast %14 : vector<2x1x32xf32> to vector<2x8x32xf32>
    %16 = arith.mulf %13, %15 : vector<2x8x32xf32>
    %cst_11 = arith.constant dense<0.000000e+00> : vector<2x8xf32>
    %17 = vector.multi_reduction <add>, %16, %cst_11 [2] : vector<2x8x32xf32> to vector<2x8xf32>
    %cst_12 = arith.constant 0xFF800000 : f32
    %18 = vector.broadcast %cst_12 : f32 to vector<2x8xf32>
    %19 = arith.select %4, %18, %17 : vector<2x8xi1>, vector<2x8xf32>
    %cst_13 = arith.constant dense<0xFF800000> : vector<2xf32>
    %20 = vector.multi_reduction <maximumf>, %19, %cst_13 [1] : vector<2x8xf32> to vector<2xf32>
    %21 = vector.shape_cast %20 : vector<2xf32> to vector<2x1xf32>
    %22 = vector.broadcast %21 : vector<2x1xf32> to vector<2x8xf32>
    %23 = arith.subf %19, %22 : vector<2x8xf32>
    %24 = math.exp %23 : vector<2x8xf32>
    %cst_14 = arith.constant dense<0.000000e+00> : vector<2xf32>
    %25 = vector.multi_reduction <add>, %24, %cst_14 [1] : vector<2x8xf32> to vector<2xf32>
    %26 = vector.shape_cast %25 : vector<2xf32> to vector<2x1xf32>
    %27 = tpu.reciprocal %26 {approx = true} : vector<2x1xf32> -> vector<2x1xf32>
    %28 = vector.broadcast %27 : vector<2x1xf32> to vector<2x8xf32>
    %29 = arith.mulf %24, %28 : vector<2x8xf32>
    %30 = vector.shape_cast %29 : vector<2x8xf32> to vector<2x8x1xf32>
    %31 = arith.extf %0 : vector<2x8x32xbf16> to vector<2x8x32xf32>
    %32 = vector.broadcast %30 : vector<2x8x1xf32> to vector<2x8x32xf32>
    %33 = arith.mulf %32, %31 : vector<2x8x32xf32>
    %cst_15 = arith.constant dense<0.000000e+00> : vector<2x32xf32>
    %34 = vector.multi_reduction <add>, %33, %cst_15 [1] : vector<2x8x32xf32> to vector<2x32xf32>
    %c0_16 = arith.constant 0 : index
    %c0_17 = arith.constant 0 : index
    %35 = vector.load %arg6[%c0_16, %c0_17] : memref<2x32xf32, #tpu.memory_space<vmem>>, vector<2x32xf32>
    tpu.vector_store %arg6[%c0_16, %c0_17], %34 {strides = array<i32>} : memref<2x32xf32, #tpu.memory_space<vmem>>, vector<2x32xf32>,
    return
  }
  func.func @transform_0(%arg0: i32) -> (i32, i32, i32) {
    %c0_i32 = arith.constant 0 : i32
    %c0_i32_0 = arith.constant 0 : i32
    %c0_i32_1 = arith.constant 0 : i32
    return %arg0, %c0_i32, %c0_i32_0 : i32, i32, i32
  }
  func.func @transform_1(%arg0: i32) -> (i32, i32) {
    %c0_i32 = arith.constant 0 : i32
    %c0_i32_0 = arith.constant 0 : i32
    return %arg0, %c0_i32 : i32, i32
  }
  func.func @transform_2(%arg0: i32) -> (i32, i32) {
    %c0_i32 = arith.constant 0 : i32
    %c0_i32_0 = arith.constant 0 : i32
    return %arg0, %c0_i32 : i32, i32
  }
  func.func @transform_3(%arg0: i32) -> (i32, i32) {
    %c0_i32 = arith.constant 0 : i32
    %c0_i32_0 = arith.constant 0 : i32
    %c0_i32_1 = arith.constant 0 : i32
    return %c0_i32, %c0_i32_0 : i32, i32
  }
  func.func @transform_4(%arg0: i32) -> (i32, i32) {
    %c0_i32 = arith.constant 0 : i32
    %c0_i32_0 = arith.constant 0 : i32
    %c0_i32_1 = arith.constant 0 : i32
    return %c0_i32, %c0_i32_0 : i32, i32
  }
  func.func @transform_5(%arg0: i32) -> (i32, i32) {
    %c0_i32 = arith.constant 0 : i32
    %c0_i32_0 = arith.constant 0 : i32
    return %arg0, %c0_i32 : i32, i32
  }
}

</mosaic_0001>

<llo_original>
// kernel: tpu_custom_call.1
$region0: #{tpu_custom_call.1}
  #allocation0 [shape = 'u32[]', space=smem, size = 0x4, offset = 0x4, fixed_abs, tag = 'smem constant byte address 0x4 - core index']
  #allocation1 [shape = 'u32[144,128]{1,0:T(1,128)}', space=vmem, size = 0x12000, scoped, tag = 'internal scratch']
  %s0 = inlined_call_operand.hbm [shape: bf16[2,8,32], index: 0, kind: input, shape index: {}]
  %s1 = inlined_call_operand.hbm [shape: f32[2,32], index: 1, kind: input, shape index: {}]
  %s2 = inlined_call_operand.vmem [shape: s32[2,8], index: 2, kind: input, shape index: {}]
  %s3 = inlined_call_operand.hbm [shape: bf16[32,32], index: 3, kind: input, shape index: {}]
  %s4 = inlined_call_operand.vmem [shape: f32[1,32], index: 4, kind: input, shape index: {}]
  %s5 = inlined_call_operand.hbm [shape: f32[2,32], index: 5, kind: output, shape index: {}]
  %s6 = sld [smem:[#allocation0]]
  $region42: #{tpu_custom_call.1} parent=0
    _
  %s8 = ssub.s32 1, %s6
  %s9 = scalar_select 0, %s8, %s6
  $region1: #{tpu_custom_call.1} parent=0
    #allocation2 [shape = 'u8[4096]{0}', space=vmem, size = 0x1000, scoped, tag = 'input window, operand 0, single buffered']
    #allocation3 [shape = 's32[1]{0}', space=sflag, size = 0x4, scoped, tag = 'scoped memory for tpu_custom_call.1']
    #allocation4 [shape = 's32[1]{0}', space=sflag, size = 0x4, scoped, tag = 'scoped memory for tpu_custom_call.1']
    #allocation5 [shape = 'u8[1024]{0}', space=vmem, size = 0x400, scoped, tag = 'input window, operand 1, single buffered']
    #allocation6 [shape = 's32[1]{0}', space=sflag, size = 0x4, scoped, tag = 'scoped memory for tpu_custom_call.1']
    #allocation7 [shape = 'u8[8192]{0}', space=vmem, size = 0x2000, scoped, tag = 'input window, operand 3, single buffered']
    #allocation8 [shape = 'u8[1024]{0}', space=vmem, size = 0x400, scoped, tag = 'output window, operand 0, single buffered']
    %10 = vsyncpa [#allocation3], 0
    %11 = vsyncpa [#allocation6], 0
    %12 = vsyncpa [#allocation4], 0
    // Predicated region
    $region2: #{tpu_custom_call.1} parent=1 // pred_check
      _
    $region3: #{tpu_custom_call.1} parent=1 // pred_check_branch
      %14 = sbr.rel (0) target = $region5
    $region4: #{tpu_custom_call.1} parent=1 // pred_region
      %s16 = ssub.s32 128, 128
      %17 = vsyncadd [#allocation3], %s16
      %s18 = sshll.u32 [#allocation2], 4
      %s19 = int_to_ptr.vmem [resolvable:$true] %s18
      %24 = dma.hbm_to_vmem [thread:$0]  %s0, 128, %s19, [#allocation3], 64, 64, 4
    $region5: #{tpu_custom_call.1} parent=1 // pred_fallthru
      _
    // Predicated region
    $region6: #{tpu_custom_call.1} parent=1 // pred_check
      _
    $region7: #{tpu_custom_call.1} parent=1 // pred_check_branch
      %26 = sbr.rel (0) target = $region9
    $region8: #{tpu_custom_call.1} parent=1 // pred_region
      %s28 = ssub.s32 32, 32
      %29 = vsyncadd [#allocation6], %s28
      %s31 = sshll.u32 [#allocation5], 4
      %s32 = int_to_ptr.vmem [resolvable:$true] %s31
      %34 = dma.hbm_to_vmem [thread:$0]  %s1, 32, %s32, [#allocation6]
    $region9: #{tpu_custom_call.1} parent=1 // pred_fallthru
      _
    // Predicated region
    $region10: #{tpu_custom_call.1} parent=1 // pred_check
      _
    $region11: #{tpu_custom_call.1} parent=1 // pred_check_branch
      %36 = sbr.rel (0) target = $region13
    $region12: #{tpu_custom_call.1} parent=1 // pred_region
      _
    $region13: #{tpu_custom_call.1} parent=1 // pred_fallthru
      _
    // Predicated region
    $region14: #{tpu_custom_call.1} parent=1 // pred_check
      _
    $region15: #{tpu_custom_call.1} parent=1 // pred_check_branch
      %38 = sbr.rel (0) target = $region17
    $region16: #{tpu_custom_call.1} parent=1 // pred_region
      %s40 = ssub.s32 256, 256
      %41 = vsyncadd [#allocation6], %s40
      %s42 = sshll.u32 [#allocation7], 4
      %s43 = int_to_ptr.vmem [resolvable:$true] %s42
      %48 = dma.hbm_to_vmem [thread:$0]  %s3, 256, %s43, [#allocation6], 64, 64, 4
    $region17: #{tpu_custom_call.1} parent=1 // pred_fallthru
      _
    // Predicated region
    $region18: #{tpu_custom_call.1} parent=1 // pred_check
      _
    $region19: #{tpu_custom_call.1} parent=1 // pred_check_branch
      %50 = sbr.rel (0) target = $region21
    $region20: #{tpu_custom_call.1} parent=1 // pred_region
      _
    $region21: #{tpu_custom_call.1} parent=1 // pred_fallthru
      _
    // Predicated region
    $region22: #{tpu_custom_call.1} parent=1 // pred_check
      _
    $region23: #{tpu_custom_call.1} parent=1 // pred_check_branch
      %52 = sbr.rel (0) target = $region25
    $region24: #{tpu_custom_call.1} parent=1 // pred_region
      %53 = dma.done [#allocation3], 128
    $region25: #{tpu_custom_call.1} parent=1 // pred_fallthru
      _
    // Predicated region
    $region26: #{tpu_custom_call.1} parent=1 // pred_check
      _
    $region27: #{tpu_custom_call.1} parent=1 // pred_check_branch
      %55 = sbr.rel (0) target = $region29
    $region28: #{tpu_custom_call.1} parent=1 // pred_region
      %56 = dma.done [#allocation6], 32
    $region29: #{tpu_custom_call.1} parent=1 // pred_fallthru
      _
    // Predicated region
    $region30: #{tpu_custom_call.1} parent=1 // pred_check
      _
    $region31: #{tpu_custom_call.1} parent=1 // pred_check_branch
      %58 = sbr.rel (0) target = $region33
    $region32: #{tpu_custom_call.1} parent=1 // pred_region
      %59 = dma.done [#allocation6], 256
    $region33: #{tpu_custom_call.1} parent=1 // pred_fallthru
      _
    %v61 = vld [vmem:[#allocation2] sm:$0xf]
    %v62 = vld [vmem:[#allocation2 + $0x4] sm:$0xf]
    %v63 = vld [vmem:[#allocation5] sm:$0x3]
    %v64 = vld [vmem:[%s2] sm:$0x3]
    %vm65 = vcmp.ne.s32.totalorder %v64, 0
    %v66 = vld [vmem:[#allocation7] sm:$0xf]
    %v67 = vld [vmem:[#allocation7 + $0x4] sm:$0xf]
    %v68 = vld [vmem:[#allocation7 + $0x8] sm:$0xf]
    %v69 = vld [vmem:[#allocation7 + $0xc] sm:$0xf]
    %v70 = vld [vmem:[%s4] sm:$0x1]
    %v72 = vlaneseq
    %v73 = vshrl.u32 %v72, 7
    %v74 = vsub.s32 0, %v73
    %v75 = vrot.slane %v70, %v74
    %v79 = vunpack.c.l.b16 %v61
    %v80 = vunpack.c.l.b16 %v62
    %v81 = vpack.c.b16 %v80, %v79
    %v86 = vunpack.c.l.b16 %v66
    %v87 = vunpack.c.l.b16 %v67
    %v88 = vunpack.c.l.b16 %v68
    %v89 = vunpack.c.l.b16 %v69
    %v90 = vpack.c.b16 %v87, %v86
    %v91 = vpack.c.b16 %v89, %v88
    %vm94 = vcmask 261120
    %v96 = vsel %vm94, %v81, 0
    %98 = vmatprep.subr.bf16.mxu0 0
    %99 = vmatpush1.bf16.msra.mxu0 0
    %100 = vmatprep.subr.bf16.mxu0 0
    %101 = vmatpush1.bf16.msra.mxu0 0
    %102 = vmatprep.subr.bf16.mxu0 0
    %103 = vmatpush1.bf16.msra.mxu0 0
    %104 = vmatprep.subr.bf16.mxu0 0
    %105 = vmatpush1.bf16.msra.mxu0 0
    %106 = vmatprep.subr.bf16.mxu0 0
    %107 = vmatpush1.bf16.msra.mxu0 0
    %108 = vmatprep.subr.bf16.mxu0 0
    %109 = vmatpush1.bf16.msra.mxu0 0
    %110 = vmatprep.subr.bf16.mxu0 0
    %111 = vmatpush1.bf16.msra.mxu0 %v91
    %112 = vmatprep.subr.bf16.mxu0 0
    %113 = vmatpush1.bf16.msra.mxu0 %v90
    %114 = vmatprep.subr.bf16.mxu0 0
    %115 = vmatpush2.bf16.msra.mxu0 0
    %116 = vmatprep.subr.bf16.mxu0 0
    %117 = vmatpush2.bf16.msra.mxu0 0
    %118 = vmatprep.subr.bf16.mxu0 0
    %119 = vmatpush2.bf16.msra.mxu0 0
    %120 = vmatprep.subr.bf16.mxu0 0
    %121 = vmatpush2.bf16.msra.mxu0 0
    %122 = vmatprep.subr.bf16.mxu0 0
    %123 = vmatpush2.bf16.msra.mxu0 0
    %124 = vmatprep.subr.bf16.mxu0 0
    %125 = vmatpush2.bf16.msra.mxu0 0
    %126 = vmatprep.subr.bf16.mxu0 0
    %127 = vmatpush2.bf16.msra.mxu0 0
    %128 = vmatprep.subr.bf16.mxu0 0
    %129 = vmatpush2.bf16.msra.mxu0 0
    %130 = vmatprep.mubr.bf16.mxu0 0
    %131 = vmatmul.mubr.bf16.gmra.mxu0 %v96
    %v132 = vpop.f32.mrf.mxu0
    %v133 = vadd.f32 %v75, %v132
    %v134 = vpop.f32.mrf.mxu0
    %v135 = vpop.f32.mrf.mxu0
    %v136 = vadd.f32 %v75, %v135
    %v137 = vpop.f32.mrf.mxu0
    %138 = vdwg.mxu0
    %v139 = vmax.f32 %v133, 0.0
    %v140 = vmax.f32 %v136, 0.0
    %v143 = vunpack.c.l.s4 1966171168
    %v144 = vunpack.c.0.s8 %v143
    %v145 = vlaneseq
    %v146 = vshrl.u32 %v145, 7
    %v147 = vsub.s32 %v144, %v146
    %v148 = vrot.slane %v63, %v147
    %v149 = vcombine.high %v148, %v148
    %v151 = vunpack.c.l.s4 1966171168
    %v152 = vunpack.c.0.s8 %v151
    %v153 = vlaneseq
    %v154 = vshrl.u32 %v153, 7
    %v155 = vsub.s32 %v152, %v154
    %v156 = vrot.slane %v148, %v155
    %v158 = vunpack.c.l.s4 1966171168
    %v159 = vunpack.c.0.s8 %v158
    %v160 = vlaneseq
    %v161 = vshrl.u32 %v160, 7
    %v162 = vsub.s32 %v159, %v161
    %v163 = vrot.slane %v149, %v162
    %v164 = vlaneseq
    %v165 = vshrl.u32 %v164, 7
    %v166 = vsub.s32 0, %v165
    %v167 = vrot.slane %v156, %v166
    %v168 = vlaneseq
    %v169 = vshrl.u32 %v168, 7
    %v170 = vsub.s32 0, %v169
    %v171 = vrot.slane %v163, %v170
    %v174 = vmul.f32 %v139, %v167
    %v175 = vmul.f32 %v140, %v171
    %v176 = vsel %vm94, %v174, 0.0
    %177 = vadd.xlane.f32.xlu0 %v176
    %v178 = vpop.xlane.xlu0 %177
    %v179 = vsel %vm94, %v175, 0.0
    %180 = vadd.xlane.f32.xlu0 %v179
    %v181 = vpop.xlane.xlu0 %180
    %v184 = vlaneseq
    %v185 = vand.u32 %v184, 127
    %v186 = vlaneseq
    %v187 = vshrl.u32 %v186, 7
    %v188 = vsub.s32 %v185, %v187
    %v189 = vrot.slane %v178, %v188
    %v190 = vlaneseq
    %v191 = vshrl.u32 %v190, 7
    %v192 = vsub.s32 %v185, %v191
    %v193 = vrot.slane %v181, %v192
    %vm194 = vcmask 1041409
    %v195 = vsel %vm194, %v193, %v189
    %v197 = vsel %vm65, -inf, %v195
    %vm198 = vcmask 58368
    %v199 = vsel %vm198, %v197, -inf
    %200 = vmax.xlane.f32.xlu0 %v199
    %v201 = vpop.xlane.xlu0 %200
    %v202 = vsub.f32 %v197, %v201
    %v203 = vmul.f32 %v202, 1.442695
    %v204 = vpow.pop %v203
    %v205 = vsel %vm198, %v204, 0.0
    %206 = vadd.xlane.f32.xlu0 %v205
    %v207 = vpop.xlane.xlu0 %206
    %v208 = vrcp.pop %v207
    %v209 = vmul.f32 %v204, %v208
    %v210 = vlaneseq
    %v211 = vshrl.u32 %v210, 7
    %v212 = vsub.s32 0, %v211
    %v213 = vrot.slane %v209, %v212
    %215 = vbcast.lane.b32.xlu0 %v213, 256
    %v216 = vpop.permute.xlu0 %215
    %v217 = vlaneseq
    %v218 = vshrl.u32 %v217, 7
    %v219 = vsub.s32 1, %v218
    %v220 = vrot.slane %v209, %v219
    %222 = vbcast.lane.b32.xlu0 %v220, 256
    %v223 = vpop.permute.xlu0 %222
    %v224 = vunpack.c.l.bf16 %v61
    %v225 = vunpack.c.l.bf16 %v62
    %v226 = vmul.f32 %v216, %v224
    %v227 = vmul.f32 %v223, %v225
    %v228 = vsel %vm94, %v226, 0.0
    %v229 = vrot.slane %v228, 4
    %v230 = vadd.f32 %v228, %v229
    %v231 = vrot.slane %v230, 2
    %v232 = vadd.f32 %v230, %v231
    %v233 = vrot.slane %v232, 1
    %v234 = vadd.f32 %v232, %v233
    %v235 = vsel %vm94, %v227, 0.0
    %v236 = vrot.slane %v235, 4
    %v237 = vadd.f32 %v235, %v236
    %v238 = vrot.slane %v237, 2
    %v239 = vadd.f32 %v237, %v238
    %v240 = vrot.slane %v239, 1
    %v241 = vadd.f32 %v239, %v240
    %v244 = vsel %vm194, %v241, %v234
    %vm246 = vcmask 254976
    %247 = vst.msk [vmem:[#allocation8] sm:$0x3] %vm246, %v244
    // Predicated region
    $region34: #{tpu_custom_call.1} parent=1 // pred_check
      _
    $region35: #{tpu_custom_call.1} parent=1 // pred_check_branch
      %249 = sbr.rel (0) target = $region37
    $region36: #{tpu_custom_call.1} parent=1 // pred_region
      %s251 = ssub.s32 32, 32
      %252 = vsyncadd [#allocation4], %s251
      %s254 = sshll.u32 [#allocation8], 4
      %s255 = int_to_ptr.vmem [resolvable:$true] %s254
      %257 = dma.vmem_to_hbm [thread:$0]  %s255, 32, %s5, [#allocation4]
    $region37: #{tpu_custom_call.1} parent=1 // pred_fallthru
      _
    // Predicated region
    $region38: #{tpu_custom_call.1} parent=1 // pred_check
      _
    $region39: #{tpu_custom_call.1} parent=1 // pred_check_branch
      %259 = sbr.rel (0) target = $region41
    $region40: #{tpu_custom_call.1} parent=1 // pred_region
      %260 = dma.done [#allocation4], 32
    $region41: #{tpu_custom_call.1} parent=1 // pred_fallthru
      _
    %261 = vsyncpa [#allocation3], 1
    %262 = vsyncpa [#allocation6], 1
    %263 = vsyncpa [#allocation4], 1

// kernel: tpu_custom_call.1
$region0: #{tpu_custom_call.1}
  #allocation0 [shape = 'u32[]', space=smem, size = 0x4, offset = 0x4, fixed_abs, tag = 'smem constant byte address 0x4 - core index']
  #allocation1 [shape = 'u32[144,128]{1,0:T(1,128)}', space=vmem, size = 0x12000, scoped, tag = 'internal scratch']
  %s0 = inlined_call_operand.hbm [shape: bf16[2,8,32], index: 0, kind: input, shape index: {}]
  %s1 = inlined_call_operand.hbm [shape: f32[2,32], index: 1, kind: input, shape index: {}]
  %s2 = inlined_call_operand.vmem [shape: s32[2,8], index: 2, kind: input, shape index: {}]
  %s3 = inlined_call_operand.hbm [shape: bf16[32,32], index: 3, kind: input, shape index: {}]
  %s4 = inlined_call_operand.vmem [shape: f32[1,32], index: 4, kind: input, shape index: {}]
  %s5 = inlined_call_operand.hbm [shape: f32[2,32], index: 5, kind: output, shape index: {}]
  %s6 = sld [smem:[#allocation0]]
  $region42: #{tpu_custom_call.1} parent=0
    _
  %s8 = ssub.s32 1, %s6
  %s9 = scalar_select 0, %s8, %s6
  $region1: #{tpu_custom_call.1} parent=0
    #allocation2 [shape = 'u8[4096]{0}', space=vmem, size = 0x1000, scoped, tag = 'input window, operand 0, single buffered']
    #allocation3 [shape = 's32[1]{0}', space=sflag, size = 0x4, scoped, tag = 'scoped memory for tpu_custom_call.1']
    #allocation4 [shape = 's32[1]{0}', space=sflag, size = 0x4, scoped, tag = 'scoped memory for tpu_custom_call.1']
    #allocation5 [shape = 'u8[1024]{0}', space=vmem, size = 0x400, scoped, tag = 'input window, operand 1, single buffered']
    #allocation6 [shape = 's32[1]{0}', space=sflag, size = 0x4, scoped, tag = 'scoped memory for tpu_custom_call.1']
    #allocation7 [shape = 'u8[8192]{0}', space=vmem, size = 0x2000, scoped, tag = 'input window, operand 3, single buffered']
    #allocation8 [shape = 'u8[1024]{0}', space=vmem, size = 0x400, scoped, tag = 'output window, operand 0, single buffered']
    %10 = vsyncpa [#allocation3], 0
    %11 = vsyncpa [#allocation6], 0
    %12 = vsyncpa [#allocation4], 0
    // Predicated region
    $region2: #{tpu_custom_call.1} parent=1 // pred_check
      _
    $region3: #{tpu_custom_call.1} parent=1 // pred_check_branch
      %14 = sbr.rel (0) target = $region5
    $region4: #{tpu_custom_call.1} parent=1 // pred_region
      %s16 = ssub.s32 128, 128
      %17 = vsyncadd [#allocation3], %s16
      %s18 = sshll.u32 [#allocation2], 4
      %s19 = int_to_ptr.vmem [resolvable:$true] %s18
      %24 = dma.hbm_to_vmem [thread:$0]  %s0, 128, %s19, [#allocation3], 64, 64, 4
    $region5: #{tpu_custom_call.1} parent=1 // pred_fallthru
      _
    // Predicated region
    $region6: #{tpu_custom_call.1} parent=1 // pred_check
      _
    $region7: #{tpu_custom_call.1} parent=1 // pred_check_branch
      %26 = sbr.rel (0) target = $region9
    $region8: #{tpu_custom_call.1} parent=1 // pred_region
      %s28 = ssub.s32 32, 32
      %29 = vsyncadd [#allocation6], %s28
      %s31 = sshll.u32 [#allocation5], 4
      %s32 = int_to_ptr.vmem [resolvable:$true] %s31
      %34 = dma.hbm_to_vmem [thread:$0]  %s1, 32, %s32, [#allocation6]
    $region9: #{tpu_custom_call.1} parent=1 // pred_fallthru
      _
    // Predicated region
    $region10: #{tpu_custom_call.1} parent=1 // pred_check
      _
    $region11: #{tpu_custom_call.1} parent=1 // pred_check_branch
      %36 = sbr.rel (0) target = $region13
    $region12: #{tpu_custom_call.1} parent=1 // pred_region
      _
    $region13: #{tpu_custom_call.1} parent=1 // pred_fallthru
      _
    // Predicated region
    $region14: #{tpu_custom_call.1} parent=1 // pred_check
      _
    $region15: #{tpu_custom_call.1} parent=1 // pred_check_branch
      %38 = sbr.rel (0) target = $region17
    $region16: #{tpu_custom_call.1} parent=1 // pred_region
      %s40 = ssub.s32 256, 256
      %41 = vsyncadd [#allocation6], %s40
      %s42 = sshll.u32 [#allocation7], 4
      %s43 = int_to_ptr.vmem [resolvable:$true] %s42
      %48 = dma.hbm_to_vmem [thread:$0]  %s3, 256, %s43, [#allocation6], 64, 64, 4
    $region17: #{tpu_custom_call.1} parent=1 // pred_fallthru
      _
    // Predicated region
    $region18: #{tpu_custom_call.1} parent=1 // pred_check
      _
    $region19: #{tpu_custom_call.1} parent=1 // pred_check_branch
      %50 = sbr.rel (0) target = $region21
    $region20: #{tpu_custom_call.1} parent=1 // pred_region
      _
    $region21: #{tpu_custom_call.1} parent=1 // pred_fallthru
      _
    // Predicated region
    $region22: #{tpu_custom_call.1} parent=1 // pred_check
      _
    $region23: #{tpu_custom_call.1} parent=1 // pred_check_branch
      %52 = sbr.rel (0) target = $region25
    $region24: #{tpu_custom_call.1} parent=1 // pred_region
      %53 = dma.done [#allocation3], 128
    $region25: #{tpu_custom_call.1} parent=1 // pred_fallthru
      _
    // Predicated region
    $region26: #{tpu_custom_call.1} parent=1 // pred_check
      _
    $region27: #{tpu_custom_call.1} parent=1 // pred_check_branch
      %55 = sbr.rel (0) target = $region29
    $region28: #{tpu_custom_call.1} parent=1 // pred_region
      %56 = dma.done [#allocation6], 32
    $region29: #{tpu_custom_call.1} parent=1 // pred_fallthru
      _
    // Predicated region
    $region30: #{tpu_custom_call.1} parent=1 // pred_check
      _
    $region31: #{tpu_custom_call.1} parent=1 // pred_check_branch
      %58 = sbr.rel (0) target = $region33
    $region32: #{tpu_custom_call.1} parent=1 // pred_region
      %59 = dma.done [#allocation6], 256
    $region33: #{tpu_custom_call.1} parent=1 // pred_fallthru
      _
    %v61 = vld [vmem:[#allocation2] sm:$0xf]
    %v62 = vld [vmem:[#allocation2 + $0x4] sm:$0xf]
    %v63 = vld [vmem:[#allocation5] sm:$0x3]
    %v64 = vld [vmem:[%s2] sm:$0x3]
    %vm65 = vcmp.ne.s32.totalorder %v64, 0
    %v66 = vld [vmem:[#allocation7] sm:$0xf]
    %v67 = vld [vmem:[#allocation7 + $0x4] sm:$0xf]
    %v68 = vld [vmem:[#allocation7 + $0x8] sm:$0xf]
    %v69 = vld [vmem:[#allocation7 + $0xc] sm:$0xf]
    %v70 = vld [vmem:[%s4] sm:$0x1]
    %v72 = vlaneseq
    %v73 = vshrl.u32 %v72, 7
    %v74 = vsub.s32 0, %v73
    %v75 = vrot.slane %v70, %v74
    %v79 = vunpack.c.l.b16 %v61
    %v80 = vunpack.c.l.b16 %v62
    %v81 = vpack.c.b16 %v80, %v79
    %v86 = vunpack.c.l.b16 %v66
    %v87 = vunpack.c.l.b16 %v67
    %v88 = vunpack.c.l.b16 %v68
    %v89 = vunpack.c.l.b16 %v69
    %v90 = vpack.c.b16 %v87, %v86
    %v91 = vpack.c.b16 %v89, %v88
    %vm94 = vcmask 261120
    %v96 = vsel %vm94, %v81, 0
    %98 = vmatprep.subr.bf16.mxu0 0
    %99 = vmatpush1.bf16.msra.mxu0 0
    %100 = vmatprep.subr.bf16.mxu0 0
    %101 = vmatpush1.bf16.msra.mxu0 0
    %102 = vmatprep.subr.bf16.mxu0 0
    %103 = vmatpush1.bf16.msra.mxu0 0
    %104 = vmatprep.subr.bf16.mxu0 0
    %105 = vmatpush1.bf16.msra.mxu0 0
    %106 = vmatprep.subr.bf16.mxu0 0
    %107 = vmatpush1.bf16.msra.mxu0 0
    %108 = vmatprep.subr.bf16.mxu0 0
    %109 = vmatpush1.bf16.msra.mxu0 0
    %110 = vmatprep.subr.bf16.mxu0 0
    %111 = vmatpush1.bf16.msra.mxu0 %v91
    %112 = vmatprep.subr.bf16.mxu0 0
    %113 = vmatpush1.bf16.msra.mxu0 %v90
    %114 = vmatprep.subr.bf16.mxu0 0
    %115 = vmatpush2.bf16.msra.mxu0 0
    %116 = vmatprep.subr.bf16.mxu0 0
    %117 = vmatpush2.bf16.msra.mxu0 0
    %118 = vmatprep.subr.bf16.mxu0 0
    %119 = vmatpush2.bf16.msra.mxu0 0
    %120 = vmatprep.subr.bf16.mxu0 0
    %121 = vmatpush2.bf16.msra.mxu0 0
    %122 = vmatprep.subr.bf16.mxu0 0
    %123 = vmatpush2.bf16.msra.mxu0 0
    %124 = vmatprep.subr.bf16.mxu0 0
    %125 = vmatpush2.bf16.msra.mxu0 0
    %126 = vmatprep.subr.bf16.mxu0 0
    %127 = vmatpush2.bf16.msra.mxu0 0
    %128 = vmatprep.subr.bf16.mxu0 0
    %129 = vmatpush2.bf16.msra.mxu0 0
    %130 = vmatprep.mubr.bf16.mxu0 0
    %131 = vmatmul.mubr.bf16.gmra.mxu0 %v96
    %v132 = vpop.f32.mrf.mxu0
    %v133 = vadd.f32 %v75, %v132
    %v134 = vpop.f32.mrf.mxu0
    %v135 = vpop.f32.mrf.mxu0
    %v136 = vadd.f32 %v75, %v135
    %v137 = vpop.f32.mrf.mxu0
    %138 = vdwg.mxu0
    %v139 = vmax.f32 %v133, 0.0
    %v140 = vmax.f32 %v136, 0.0
    %v143 = vunpack.c.l.s4 1966171168
    %v144 = vunpack.c.0.s8 %v143
    %v145 = vlaneseq
    %v146 = vshrl.u32 %v145, 7
    %v147 = vsub.s32 %v144, %v146
    %v148 = vrot.slane %v63, %v147
    %v149 = vcombine.high %v148, %v148
    %v151 = vunpack.c.l.s4 1966171168
    %v152 = vunpack.c.0.s8 %v151
    %v153 = vlaneseq
    %v154 = vshrl.u32 %v153, 7
    %v155 = vsub.s32 %v152, %v154
    %v156 = vrot.slane %v148, %v155
    %v158 = vunpack.c.l.s4 1966171168
    %v159 = vunpack.c.0.s8 %v158
    %v160 = vlaneseq
    %v161 = vshrl.u32 %v160, 7
    %v162 = vsub.s32 %v159, %v161
    %v163 = vrot.slane %v149, %v162
    %v164 = vlaneseq
    %v165 = vshrl.u32 %v164, 7
    %v166 = vsub.s32 0, %v165
    %v167 = vrot.slane %v156, %v166
    %v168 = vlaneseq
    %v169 = vshrl.u32 %v168, 7
    %v170 = vsub.s32 0, %v169
    %v171 = vrot.slane %v163, %v170
    %v174 = vmul.f32 %v139, %v167
    %v175 = vmul.f32 %v140, %v171
    %v176 = vsel %vm94, %v174, 0.0
    %177 = vadd.xlane.f32.xlu0 %v176
    %v178 = vpop.xlane.xlu0 %177
    %v179 = vsel %vm94, %v175, 0.0
    %180 = vadd.xlane.f32.xlu0 %v179
    %v181 = vpop.xlane.xlu0 %180
    %v184 = vlaneseq
    %v185 = vand.u32 %v184, 127
    %v186 = vlaneseq
    %v187 = vshrl.u32 %v186, 7
    %v188 = vsub.s32 %v185, %v187
    %v189 = vrot.slane %v178, %v188
    %v190 = vlaneseq
    %v191 = vshrl.u32 %v190, 7
    %v192 = vsub.s32 %v185, %v191
    %v193 = vrot.slane %v181, %v192
    %vm194 = vcmask 1041409
    %v195 = vsel %vm194, %v193, %v189
    %v197 = vsel %vm65, -inf, %v195
    %vm198 = vcmask 58368
    %v199 = vsel %vm198, %v197, -inf
    %200 = vmax.xlane.f32.xlu0 %v199
    %v201 = vpop.xlane.xlu0 %200
    %v202 = vsub.f32 %v197, %v201
    %v203 = vmul.f32 %v202, 1.442695
    %v204 = vpow.pop %v203
    %v205 = vsel %vm198, %v204, 0.0
    %206 = vadd.xlane.f32.xlu0 %v205
    %v207 = vpop.xlane.xlu0 %206
    %v208 = vrcp.pop %v207
    %v209 = vmul.f32 %v204, %v208
    %v210 = vlaneseq
    %v211 = vshrl.u32 %v210, 7
    %v212 = vsub.s32 0, %v211
    %v213 = vrot.slane %v209, %v212
    %215 = vbcast.lane.b32.xlu0 %v213, 256
    %v216 = vpop.permute.xlu0 %215
    %v217 = vlaneseq
    %v218 = vshrl.u32 %v217, 7
    %v219 = vsub.s32 1, %v218
    %v220 = vrot.slane %v209, %v219
    %222 = vbcast.lane.b32.xlu0 %v220, 256
    %v223 = vpop.permute.xlu0 %222
    %v224 = vunpack.c.l.bf16 %v61
    %v225 = vunpack.c.l.bf16 %v62
    %v226 = vmul.f32 %v216, %v224
    %v227 = vmul.f32 %v223, %v225
    %v228 = vsel %vm94, %v226, 0.0
    %v229 = vrot.slane %v228, 4
    %v230 = vadd.f32 %v228, %v229
    %v231 = vrot.slane %v230, 2
    %v232 = vadd.f32 %v230, %v231
    %v233 = vrot.slane %v232, 1
    %v234 = vadd.f32 %v232, %v233
    %v235 = vsel %vm94, %v227, 0.0
    %v236 = vrot.slane %v235, 4
    %v237 = vadd.f32 %v235, %v236
    %v238 = vrot.slane %v237, 2
    %v239 = vadd.f32 %v237, %v238
    %v240 = vrot.slane %v239, 1
    %v241 = vadd.f32 %v239, %v240
    %v244 = vsel %vm194, %v241, %v234
    %vm246 = vcmask 254976
    %247 = vst.msk [vmem:[#allocation8] sm:$0x3] %vm246, %v244
    // Predicated region
    $region34: #{tpu_custom_call.1} parent=1 // pred_check
      _
    $region35: #{tpu_custom_call.1} parent=1 // pred_check_branch
      %249 = sbr.rel (0) target = $region37
    $region36: #{tpu_custom_call.1} parent=1 // pred_region
      %s251 = ssub.s32 32, 32
      %252 = vsyncadd [#allocation4], %s251
      %s254 = sshll.u32 [#allocation8], 4
      %s255 = int_to_ptr.vmem [resolvable:$true] %s254
      %257 = dma.vmem_to_hbm [thread:$0]  %s255, 32, %s5, [#allocation4]
    $region37: #{tpu_custom_call.1} parent=1 // pred_fallthru
      _
    // Predicated region
    $region38: #{tpu_custom_call.1} parent=1 // pred_check
      _
    $region39: #{tpu_custom_call.1} parent=1 // pred_check_branch
      %259 = sbr.rel (0) target = $region41
    $region40: #{tpu_custom_call.1} parent=1 // pred_region
      %260 = dma.done [#allocation4], 32
    $region41: #{tpu_custom_call.1} parent=1 // pred_fallthru
      _
    %261 = vsyncpa [#allocation3], 1
    %262 = vsyncpa [#allocation6], 1
    %263 = vsyncpa [#allocation4], 1

</llo_original>
